<compile_context>
chip_gen: v7x
topology: tpu7x:2x2x1
jax: 0.10.0
libtpu: 0.0.40
codegen_flags: <defaults>
</compile_context>

<pallas_src>
import jax
import jax.numpy as jnp
from jax import lax
from jax.experimental import pallas as pl
from jax.experimental.pallas import tpu as pltpu


def _detect_vmem_capacity_bytes():
    """Best-effort physical per-core VMEM size in bytes (generation gate)."""
    # Device-kind is the most unambiguous signal for the 128-MiB generations.
    try:
        kind = jax.devices()[0].device_kind.lower()
        if ("v4" in kind) or ("v5" in kind) or ("v6" in kind):
            return 128 * 1024 * 1024
        if ("v2" in kind) or ("v3" in kind):
            return 16 * 1024 * 1024
    except Exception:
        pass
    try:
        info = pltpu.get_tpu_info()
        for name in ("vmem_capacity_bytes", "vmem_size_bytes", "vmem_bytes"):
            v = getattr(info, name, None)
            if v:
                return int(v)
    except Exception:
        pass
    return 64 * 1024 * 1024  # conservative (v7x-sized) fallback


def _make_min_mse_kernel(tile_rows, d, g, bps, full_blocks, valid_rows, needs_mask):
    """Kernel over a (tile_rows, g*d) slab; each lane segment of width d is one
    original row whose min |error| (squared afterwards) contributes to the mean."""

    def kernel(pred_ref, tgt_ref, out_ref, acc_ref):
        c = pl.program_id(0)   # core-parallel split index
        i = pl.program_id(1)   # sequential row-block index within the split

        @pl.when(i == 0)
        def _init():
            acc_ref[...] = jnp.zeros_like(acc_ref)

        # DMA'd in native dtype; all reduction math in f32.
        p = pred_ref[...].astype(jnp.float32)
        t = tgt_ref[...].astype(jnp.float32)
        ad = jnp.abs(t - p)                                   # (tile_rows, g*d)

        # Segmented min over |diff| (square is monotone on |x|); square only
        # the narrow (tile_rows, 1) per-segment result, then sum segments.
        row_sq = None
        for j in range(g):
            seg_min = jnp.min(ad[:, j * d:(j + 1) * d], axis=-1, keepdims=True)
            seg_sq = seg_min * seg_min
            row_sq = seg_sq if row_sq is None else row_sq + seg_sq

        if needs_mask:
            gb = c * bps + i   # global row-block index (unclamped)

            @pl.when(gb < full_blocks)
            def _full_block():
                acc_ref[...] += jnp.sum(row_sq, axis=0, keepdims=True)

            @pl.when(gb >= full_blocks)
            def _ragged_or_phantom_block():
                # Pure select (never multiply-by-mask): garbage rows cannot
                # poison the sum even if they hold NaN/Inf.
                row_ids = (lax.broadcasted_iota(jnp.int32, (tile_rows, 1), 0)
                           + gb * tile_rows)
                masked = jnp.where(row_ids < valid_rows, row_sq, 0.0)
                acc_ref[...] += jnp.sum(masked, axis=0, keepdims=True)
        else:
            acc_ref[...] += jnp.sum(row_sq, axis=0, keepdims=True)

        @pl.when(i == pl.num_programs(1) - 1)
        def _finalize():
            out_ref[...] = jnp.reshape(acc_ref[...], (1, 1, 1))

    return kernel


def min_mse_loss(y_pred, targets, *, tile_rows=None, target_block_bytes=None):
    """Pallas implementation of CustomLoss_min_MSE.forward."""
    assert y_pred.shape == targets.shape, "y_pred / targets shape mismatch"
    d = y_pred.shape[-1]
    pred2d = y_pred.reshape(-1, d)   # keep native dtype; cast inside kernel
    tgt2d = targets.reshape(-1, d)
    m = pred2d.shape[0]              # number of min-values being averaged

    # ---- Lane-dense packing (free contiguous reshape) ----------------------
    # Largest g that divides the row count (g*d | 128).  Padding for
    # non-divisible row counts or d like 48/96 would force an HBM-materialising
    # copy of a memory-bound stream, so it is intentionally skipped.
    g = 1
    if 8 <= d < 128 and 128 % d == 0:
        for cand in range(128 // d, 1, -1):
            if m % cand == 0 and 128 % (cand * d) == 0:
                g = cand
                break
    mp = m // g                      # packed row count
    lanes = g * d
    if g > 1:
        pred2d = pred2d.reshape(mp, lanes)
        tgt2d = tgt2d.reshape(mp, lanes)

    itemsize = jnp.dtype(pred2d.dtype).itemsize
    lanes_pad = ((lanes + 127) // 128) * 128
    bytes_per_row = lanes_pad * itemsize
    sub_align = max(8, 32 // itemsize)   # native sublane tiling: f32 8, bf16 16, i8 32

    # ---- Generation-aware block size & VMEM budget --------------------------
    vmem_cap = _detect_vmem_capacity_bytes()
    if vmem_cap >= (100 << 20):          # 128-MiB VMEM parts: v4 / v5e / v6e
        cap_limit, default_block = 96 << 20, 8 << 20
    elif vmem_cap >= (48 << 20):         # 64-MiB VMEM parts: v7x
        cap_limit, default_block = 48 << 20, 4 << 20
    else:                                # small-VMEM fallback
        cap_limit, default_block = max(8 << 20, vmem_cap // 2), 1 << 20
    if target_block_bytes is None:
        target_block_bytes = default_block

    if tile_rows is None:
        tile_rows = max(sub_align,
                        (target_block_bytes // bytes_per_row) // sub_align * sub_align)
    if tile_rows >= mp:
        tile_rows = mp                                  # one block spans all rows
    else:
        tile_rows = max(sub_align, (tile_rows // sub_align) * sub_align)

    # Residency: 2 inputs x 2 pipeline buffers (native dtype) + ~3 f32 temps.
    def _residency(tr):
        rows_pad = ((tr + 7) // 8) * 8
        return 4 * rows_pad * lanes_pad * itemsize + 3 * rows_pad * lanes_pad * 4

    vmem_budget = max(4 << 20, cap_limit - (8 << 20))
    while _residency(tile_rows) > vmem_budget and tile_rows > sub_align:
        tile_rows = max(sub_align, ((tile_rows // 2) // sub_align) * sub_align)

    vmem_limit = int(min(cap_limit,
                         max(_residency(tile_rows) + (8 << 20),
                             min(32 << 20, cap_limit))))

    # ---- Grid: 2-way core-parallel split x sequential row-block reduction ---
    total_blocks = pl.cdiv(mp, tile_rows)
    full_blocks = mp // tile_rows
    n_split = 2 if total_blocks >= 2 else 1
    bps = pl.cdiv(total_blocks, n_split)                # blocks per split
    has_phantom = (n_split * bps != total_blocks)
    needs_mask = has_phantom or (full_blocks != total_blocks)
    last_block = total_blocks - 1

    if has_phantom:
        # Clamp phantom block indices in-range; their rows are masked to zero.
        def row_map(c, i):
            return (jnp.minimum(c * bps + i, last_block), 0)
    else:
        def row_map(c, i):
            return (c * bps + i, 0)

    kernel = _make_min_mse_kernel(tile_rows, d, g, bps, full_blocks, mp, needs_mask)

    cost = pl.CostEstimate(
        flops=3 * m * d + 2 * m,                        # sub + abs + min-cmp (+ sq/add)
        transcendentals=0,
        bytes_accessed=2 * m * d * itemsize + n_split * 4,
    )

    partial = pl.pallas_call(
        kernel,
        out_shape=jax.ShapeDtypeStruct((n_split, 1, 1), jnp.float32),
        grid_spec=pltpu.PrefetchScalarGridSpec(
            num_scalar_prefetch=0,
            grid=(n_split, bps),
            in_specs=[
                pl.BlockSpec((tile_rows, lanes), row_map),
                pl.BlockSpec((tile_rows, lanes), row_map),
            ],
            out_specs=pl.BlockSpec((1, 1, 1), lambda c, i: (c, 0, 0)),
            scratch_shapes=[pltpu.VMEM((1, 1), jnp.float32)],
        ),
        compiler_params=pltpu.CompilerParams(
            dimension_semantics=("parallel", "arbitrary"),
            vmem_limit_bytes=vmem_limit,
        ),
        cost_estimate=cost,
    )(pred2d, tgt2d)

    # Per-core partial sums -> final mean in the wrapper (better f32 accuracy
    # than a single long running sum, and required for the megacore split).
    return jnp.sum(partial) / jnp.float32(m)


if __name__ == "__main__":
    key = jax.random.PRNGKey(0)
    ks = jax.random.split(key, 6)

    def reference(y_pred, targets):
        p = y_pred.astype(jnp.float32)
        t = targets.astype(jnp.float32)
        return jnp.mean(jnp.min(jnp.square(t - p), axis=-1))

    # Case 1: module-default small shape (batch=2, seq=8, hidden=32), f32.
    # Exercises the fully lane-packed single-block path (g = 4, no masking).
    B, S, D = 2, 8, 32
    y_pred = jax.random.normal(ks[0], (B, S, D), dtype=jnp.float32)
    targets = jax.random.normal(ks[1], (B, S, D), dtype=jnp.float32)
    loss = jax.block_until_ready(min_mse_loss(y_pred, targets))
    ref = reference(y_pred, targets)
    assert jnp.allclose(loss, ref, rtol=1e-5, atol=1e-6), (loss, ref)

    # Case 2: multi-block with ragged last block AND a phantom block on the
    # 2-way core split (forced small tile); partial lane packing (g = 2).
    y2 = jax.random.normal(ks[2], (3, 50, 32), dtype=jnp.float32)
    t2 = jax.random.normal(ks[3], (3, 50, 32), dtype=jnp.float32)
    loss2 = jax.block_until_ready(min_mse_loss(y2, t2, tile_rows=16))
    ref2 = reference(y2, t2)
    assert jnp.allclose(loss2, ref2, rtol=1e-5, atol=1e-6), (loss2, ref2)

    # Case 3: bf16 inputs, fully packed path (g = 8), ragged last block,
    # in-kernel upcast (native-dtype DMA), 16-row sublane alignment.
    y3 = jax.random.normal(ks[4], (4, 100, 16), dtype=jnp.float32).astype(jnp.bfloat16)
    t3 = jax.random.normal(ks[5], (4, 100, 16), dtype=jnp.float32).astype(jnp.bfloat16)
    loss3 = jax.block_until_ready(min_mse_loss(y3, t3, tile_rows=16))
    ref3 = reference(y3, t3)
    assert jnp.allclose(loss3, ref3, rtol=1e-3, atol=1e-3), (loss3, ref3)

    print("KERNEL_OK")
</pallas_src>

<mosaic_0001>
module attributes {stable_mosaic.version = 11 : i64} {
  func.func @kernel(%arg0: i32, %arg1: i32, %arg2: memref<4x128xf32, #tpu.memory_space<vmem>>, %arg3: memref<4x128xf32, #tpu.memory_space<vmem>>, %arg4: memref<1x1x1xf32, #tpu.memory_space<vmem>>, %arg5: memref<1x1xf32, #tpu.memory_space<vmem>>) attributes {dimension_semantics = [#tpu.dimension_semantics<parallel>, #tpu.dimension_semantics<arbitrary>], iteration_bounds = array<i64: 1, 1>, scalar_prefetch = 0 : i64, scratch_operands = 1 : i64, tpu.core_type = #tpu.core_type<tc>, window_params = [{transform_indices = @transform_0, window_bounds = array<i64: 4, 128>}, {transform_indices = @transform_1, window_bounds = array<i64: 4, 128>}, {transform_indices = @transform_2, window_bounds = array<i64: 1, 1, 1>}]} {
    %c0_i32 = arith.constant 0 : i32
    %0 = arith.cmpi eq, %arg1, %c0_i32 : i32
    %1 = arith.extui %0 : i1 to i32
    %c0_i32_0 = arith.constant 0 : i32
    %2 = arith.cmpi ne, %1, %c0_i32_0 : i32
    scf.if %2 {
      %cst_14 = arith.constant 0.000000e+00 : f32
      %34 = vector.broadcast %cst_14 : f32 to vector<1x1xf32>
      %c0_15 = arith.constant 0 : index
      %c0_16 = arith.constant 0 : index
      %35 = vector.load %arg5[%c0_15, %c0_16] : memref<1x1xf32, #tpu.memory_space<vmem>>, vector<1x1xf32>
      tpu.vector_store %arg5[%c0_15, %c0_16], %34 {strides = array<i32>} : memref<1x1xf32, #tpu.memory_space<vmem>>, vector<1x1xf32>,
    } else {
    }
    %c0 = arith.constant 0 : index
    %c0_1 = arith.constant 0 : index
    %3 = vector.load %arg2[%c0, %c0_1] : memref<4x128xf32, #tpu.memory_space<vmem>>, vector<4x128xf32>
    %c0_2 = arith.constant 0 : index
    %c0_3 = arith.constant 0 : index
    %4 = vector.load %arg3[%c0_2, %c0_3] : memref<4x128xf32, #tpu.memory_space<vmem>>, vector<4x128xf32>
    %5 = arith.subf %4, %3 : vector<4x128xf32>
    %6 = math.absf %5 : vector<4x128xf32>
    %7 = vector.extract_strided_slice %6 {offsets = [0, 0], sizes = [4, 32], strides = [1, 1]} : vector<4x128xf32> to vector<4x32xf32>
    %cst = arith.constant dense<0x7F800000> : vector<4xf32>
    %8 = vector.multi_reduction <minimumf>, %7, %cst [1] : vector<4x32xf32> to vector<4xf32>
    %9 = vector.shape_cast %8 : vector<4xf32> to vector<4x1xf32>
    %10 = arith.mulf %9, %9 : vector<4x1xf32>
    %11 = vector.extract_strided_slice %6 {offsets = [0, 32], sizes = [4, 32], strides = [1, 1]} : vector<4x128xf32> to vector<4x32xf32>
    %cst_4 = arith.constant dense<0x7F800000> : vector<4xf32>
    %12 = vector.multi_reduction <minimumf>, %11, %cst_4 [1] : vector<4x32xf32> to vector<4xf32>
    %13 = vector.shape_cast %12 : vector<4xf32> to vector<4x1xf32>
    %14 = arith.mulf %13, %13 : vector<4x1xf32>
    %15 = arith.addf %10, %14 : vector<4x1xf32>
    %16 = vector.extract_strided_slice %6 {offsets = [0, 64], sizes = [4, 32], strides = [1, 1]} : vector<4x128xf32> to vector<4x32xf32>
    %cst_5 = arith.constant dense<0x7F800000> : vector<4xf32>
    %17 = vector.multi_reduction <minimumf>, %16, %cst_5 [1] : vector<4x32xf32> to vector<4xf32>
    %18 = vector.shape_cast %17 : vector<4xf32> to vector<4x1xf32>
    %19 = arith.mulf %18, %18 : vector<4x1xf32>
    %20 = arith.addf %15, %19 : vector<4x1xf32>
    %21 = vector.extract_strided_slice %6 {offsets = [0, 96], sizes = [4, 32], strides = [1, 1]} : vector<4x128xf32> to vector<4x32xf32>
    %cst_6 = arith.constant dense<0x7F800000> : vector<4xf32>
    %22 = vector.multi_reduction <minimumf>, %21, %cst_6 [1] : vector<4x32xf32> to vector<4xf32>
    %23 = vector.shape_cast %22 : vector<4xf32> to vector<4x1xf32>
    %24 = arith.mulf %23, %23 : vector<4x1xf32>
    %25 = arith.addf %20, %24 : vector<4x1xf32>
    %c0_7 = arith.constant 0 : index
    %c0_8 = arith.constant 0 : index
    %26 = vector.load %arg5[%c0_7, %c0_8] : memref<1x1xf32, #tpu.memory_space<vmem>>, vector<1x1xf32>
    %cst_9 = arith.constant dense<0.000000e+00> : vector<1xf32>
    %27 = vector.multi_reduction <add>, %25, %cst_9 [0] : vector<4x1xf32> to vector<1xf32>
    %28 = vector.shape_cast %27 : vector<1xf32> to vector<1x1xf32>
    %29 = arith.addf %26, %28 : vector<1x1xf32>
    %c0_10 = arith.constant 0 : index
    %c0_11 = arith.constant 0 : index
    %30 = vector.load %arg5[%c0_10, %c0_11] : memref<1x1xf32, #tpu.memory_space<vmem>>, vector<1x1xf32>
    tpu.vector_store %arg5[%c0_10, %c0_11], %29 {strides = array<i32>} : memref<1x1xf32, #tpu.memory_space<vmem>>, vector<1x1xf32>,
    %c0_i32_12 = arith.constant 0 : i32
    %31 = arith.cmpi eq, %arg1, %c0_i32_12 : i32
    %32 = arith.extui %31 : i1 to i32
    %c0_i32_13 = arith.constant 0 : i32
    %33 = arith.cmpi ne, %32, %c0_i32_13 : i32
    scf.if %33 {
      %c0_14 = arith.constant 0 : index
      %c0_15 = arith.constant 0 : index
      %34 = vector.load %arg5[%c0_14, %c0_15] : memref<1x1xf32, #tpu.memory_space<vmem>>, vector<1x1xf32>
      %35 = vector.shape_cast %34 : vector<1x1xf32> to vector<1x1x1xf32>
      %c0_16 = arith.constant 0 : index
      %c0_17 = arith.constant 0 : index
      %c0_18 = arith.constant 0 : index
      %36 = vector.load %arg4[%c0_16, %c0_17, %c0_18] : memref<1x1x1xf32, #tpu.memory_space<vmem>>, vector<1x1x1xf32>
      tpu.vector_store %arg4[%c0_16, %c0_17, %c0_18], %35 {strides = array<i32>} : memref<1x1x1xf32, #tpu.memory_space<vmem>>, vector<1x1x1xf32>,
    } else {
    }
    return
  }
  func.func @transform_0(%arg0: i32, %arg1: i32) -> (i32, i32) {
    %c1_i32 = arith.constant 1 : i32
    %0 = arith.muli %arg0, %c1_i32 : i32
    %1 = arith.addi %0, %arg1 : i32
    %c0_i32 = arith.constant 0 : i32
    %c0_i32_0 = arith.constant 0 : i32
    return %1, %c0_i32 : i32, i32
  }
  func.func @transform_1(%arg0: i32, %arg1: i32) -> (i32, i32) {
    %c1_i32 = arith.constant 1 : i32
    %0 = arith.muli %arg0, %c1_i32 : i32
    %1 = arith.addi %0, %arg1 : i32
    %c0_i32 = arith.constant 0 : i32
    %c0_i32_0 = arith.constant 0 : i32
    return %1, %c0_i32 : i32, i32
  }
  func.func @transform_2(%arg0: i32, %arg1: i32) -> (i32, i32, i32) {
    %c0_i32 = arith.constant 0 : i32
    %c0_i32_0 = arith.constant 0 : i32
    %c0_i32_1 = arith.constant 0 : i32
    return %arg0, %c0_i32, %c0_i32_0 : i32, i32, i32
  }
}

</mosaic_0001>

<llo_original>
// kernel: tpu_custom_call.1
$region0: #{tpu_custom_call.1}
  #allocation0 [shape = 'u32[]', space=smem, size = 0x4, offset = 0x4, fixed_abs, tag = 'smem constant byte address 0x4 - core index']
  #allocation1 [shape = 'u32[144,128]{1,0:T(1,128)}', space=vmem, size = 0x12000, scoped, tag = 'internal scratch']
  #allocation2 [shape = 'f32[1,1]{1,0:T(1,128)}', space=vmem, size = 0x200, scoped, tag = 'scratch operand']
  %s0 = inlined_call_operand.hbm [shape: f32[4,128], index: 0, kind: input, shape index: {}]
  %s1 = inlined_call_operand.hbm [shape: f32[4,128], index: 1, kind: input, shape index: {}]
  %s2 = inlined_call_operand.hbm [shape: f32[1,1,1], index: 2, kind: output, shape index: {}]
  %s3 = sld [smem:[#allocation0]]
  $region34: #{tpu_custom_call.1} parent=0
    _
  %s5 = ssub.s32 1, %s3
  %s6 = scalar_select 0, %s5, %s3
  $region1: #{tpu_custom_call.1} parent=0
    #allocation3 [shape = 'u8[2048]{0}', space=vmem, size = 0x800, scoped, tag = 'input window, operand 0, single buffered']
    #allocation4 [shape = 's32[1]{0}', space=sflag, size = 0x4, scoped, tag = 'scoped memory for tpu_custom_call.1']
    #allocation5 [shape = 's32[1]{0}', space=sflag, size = 0x4, scoped, tag = 'scoped memory for tpu_custom_call.1']
    #allocation6 [shape = 'u8[2048]{0}', space=vmem, size = 0x800, scoped, tag = 'input window, operand 1, single buffered']
    #allocation7 [shape = 's32[1]{0}', space=sflag, size = 0x4, scoped, tag = 'scoped memory for tpu_custom_call.1']
    #allocation8 [shape = 'u8[512]{0}', space=vmem, size = 0x400, scoped, tag = 'output window, operand 0, single buffered']
    %7 = vsyncpa [#allocation4], 0
    %8 = vsyncpa [#allocation7], 0
    %9 = vsyncpa [#allocation5], 0
    // Predicated region
    $region2: #{tpu_custom_call.1} parent=1 // pred_check
      _
    $region3: #{tpu_custom_call.1} parent=1 // pred_check_branch
      %11 = sbr.rel (0) target = $region5
    $region4: #{tpu_custom_call.1} parent=1 // pred_region
      %s12 = sadd.s32 0, 0
      %s14 = ssub.s32 64, 64
      %15 = vsyncadd [#allocation4], %s14
      %s16 = smul.addr %s12, 64
      %s17 = scalar_lea.hbm %s0, %s16
      %s19 = sshll.u32 [#allocation3], 4
      %s20 = int_to_ptr.vmem [resolvable:$true] %s19
      %22 = dma.hbm_to_vmem [thread:$0]  %s17, 64, %s20, [#allocation4]
    $region5: #{tpu_custom_call.1} parent=1 // pred_fallthru
      _
    // Predicated region
    $region6: #{tpu_custom_call.1} parent=1 // pred_check
      _
    $region7: #{tpu_custom_call.1} parent=1 // pred_check_branch
      %24 = sbr.rel (0) target = $region9
    $region8: #{tpu_custom_call.1} parent=1 // pred_region
      %s25 = sadd.s32 0, 0
      %s27 = ssub.s32 64, 64
      %28 = vsyncadd [#allocation7], %s27
      %s29 = smul.addr %s25, 64
      %s30 = scalar_lea.hbm %s1, %s29
      %s32 = sshll.u32 [#allocation6], 4
      %s33 = int_to_ptr.vmem [resolvable:$true] %s32
      %35 = dma.hbm_to_vmem [thread:$0]  %s30, 64, %s33, [#allocation7]
    $region9: #{tpu_custom_call.1} parent=1 // pred_fallthru
      _
    // Predicated region
    $region10: #{tpu_custom_call.1} parent=1 // pred_check
      _
    $region11: #{tpu_custom_call.1} parent=1 // pred_check_branch
      %37 = sbr.rel (0) target = $region13
    $region12: #{tpu_custom_call.1} parent=1 // pred_region
      %38 = dma.done [#allocation4], 64
    $region13: #{tpu_custom_call.1} parent=1 // pred_fallthru
      _
    // Predicated region
    $region14: #{tpu_custom_call.1} parent=1 // pred_check
      _
    $region15: #{tpu_custom_call.1} parent=1 // pred_check_branch
      %40 = sbr.rel (0) target = $region17
    $region16: #{tpu_custom_call.1} parent=1 // pred_region
      %41 = dma.done [#allocation7], 64
    $region17: #{tpu_custom_call.1} parent=1 // pred_fallthru
      _
    %s42 = sadd.s32 0, 0
    %s43 = sadd.s32 0, 0
    %p44 = scmp.eq.s32.totalorder 0, 0
    // Predicated region
    $region18: #{tpu_custom_call.1} parent=1 // pred_check
      %p45 = pneg %p44
    $region19: #{tpu_custom_call.1} parent=1 // pred_check_branch
      %47 = sbr.rel (%p45) target = $region21
    $region20: #{tpu_custom_call.1} parent=1 // pred_region
      %vm48 = vcmask 0
      %49 = vst.msk [vmem:[#allocation2] sm:$0x1] %vm48, 0.0
    $region21: #{tpu_custom_call.1} parent=1 // pred_fallthru
      _
    %v50 = vld [vmem:[#allocation3] sm:$0xf]
    %v51 = vld [vmem:[#allocation6] sm:$0xf]
    %v52 = vsub.f32 %v51, %v50
    %v53 = vand.u32 2147483647, %v52
    %vm54 = vcmask 257024
    %v55 = vsel %vm54, %v53, inf
    %56 = vmin.xlane.f32.xlu0 %v55
    %v57 = vpop.xlane.xlu0 %56
    %v58 = vmul.f32 %v57, %v57
    %vm59 = vcmask 519424
    %v60 = vsel %vm59, %v53, inf
    %61 = vmin.xlane.f32.xlu0 %v60
    %v62 = vpop.xlane.xlu0 %61
    %v63 = vmul.f32 %v62, %v62
    %v64 = vadd.f32 %v58, %v63
    %vm65 = vcmask 781824
    %v66 = vsel %vm65, %v53, inf
    %67 = vmin.xlane.f32.xlu0 %v66
    %v68 = vpop.xlane.xlu0 %67
    %v69 = vmul.f32 %v68, %v68
    %v70 = vadd.f32 %v64, %v69
    %vm71 = vcmask 1044224
    %v72 = vsel %vm71, %v53, inf
    %73 = vmin.xlane.f32.xlu0 %v72
    %v74 = vpop.xlane.xlu0 %73
    %v75 = vmul.f32 %v74, %v74
    %v76 = vadd.f32 %v70, %v75
    %v77 = vld [vmem:[#allocation2] sm:$0x1]
    %vm78 = vcmask 1043456
    %v79 = vsel %vm78, %v76, 0.0
    %v80 = vrot.slane %v79, 4
    %v81 = vadd.f32 %v79, %v80
    %v82 = vrot.slane %v81, 2
    %v83 = vadd.f32 %v81, %v82
    %v84 = vrot.slane %v83, 1
    %v85 = vadd.f32 %v83, %v84
    %v86 = vadd.f32 %v77, %v85
    %vm87 = vcmask 0
    %88 = vst.msk [vmem:[#allocation2] sm:$0x1] %vm87, %v86
    // Predicated region
    $region22: #{tpu_custom_call.1} parent=1 // pred_check
      %p89 = pneg %p44
    $region23: #{tpu_custom_call.1} parent=1 // pred_check_branch
      %91 = sbr.rel (%p89) target = $region25
    $region24: #{tpu_custom_call.1} parent=1 // pred_region
      %v92 = vld [vmem:[#allocation2] sm:$0x1]
      %93 = vst.msk [vmem:[#allocation8] sm:$0x1] %vm87, %v92
    $region25: #{tpu_custom_call.1} parent=1 // pred_fallthru
      _
    // Predicated region
    $region26: #{tpu_custom_call.1} parent=1 // pred_check
      _
    $region27: #{tpu_custom_call.1} parent=1 // pred_check_branch
      %95 = sbr.rel (0) target = $region29
    $region28: #{tpu_custom_call.1} parent=1 // pred_region
      %s97 = ssub.s32 16, 16
      %98 = vsyncadd [#allocation5], %s97
      %s100 = sshll.u32 [#allocation8], 4
      %s101 = int_to_ptr.vmem [resolvable:$true] %s100
      %103 = dma.vmem_to_hbm [thread:$0]  %s101, 16, %s2, [#allocation5]
    $region29: #{tpu_custom_call.1} parent=1 // pred_fallthru
      _
    // Predicated region
    $region30: #{tpu_custom_call.1} parent=1 // pred_check
      _
    $region31: #{tpu_custom_call.1} parent=1 // pred_check_branch
      %105 = sbr.rel (0) target = $region33
    $region32: #{tpu_custom_call.1} parent=1 // pred_region
      %106 = dma.done [#allocation5], 16
    $region33: #{tpu_custom_call.1} parent=1 // pred_fallthru
      _
    %107 = vsyncpa [#allocation4], 1
    %108 = vsyncpa [#allocation7], 1
    %109 = vsyncpa [#allocation5], 1

</llo_original>
